<compile_context>
chip_gen: v5e
topology: v5e:2x2
jax: 0.10.0
libtpu: 0.0.40
codegen_flags: <defaults>
</compile_context>

<pallas_src>
import functools

import jax
import jax.numpy as jnp
from jax.experimental import pallas as pl
from jax.experimental.pallas import tpu as pltpu


def _round_up(v, m):
    return ((v + m - 1) // m) * m


def _vmem_capacity_bytes():
    try:
        return int(pltpu.get_tpu_info().vmem_capacity_bytes)
    except Exception:
        return 64 << 20  # conservative (v7x physical VMEM)


def _pick_tn(S, N, cin, cout, itemsize):
    """Lane-tile (spatial elements per grid step), VMEM-budgeted."""
    cin_p, cout_p = _round_up(cin, 8), _round_up(cout, 8)
    budget = min(_vmem_capacity_bytes() // 2, 48 << 20)  # headroom for scoped VMEM
    per_lane = (cin_p + cout_p) * itemsize * 2           # in + out, double-buffered
    tn = min(budget // per_lane, 128 * 1024)
    # Minimum-steps guard: keep N * num_steps >= ~8 so v7x megacore gets work on
    # both cores and the input/output double-buffer pipeline stays active.
    steps_per_batch = pl.cdiv(8, N)
    tn = min(tn, _round_up(pl.cdiv(S, steps_per_batch), 1024))
    return max(1024, _round_up(tn, 1024))


def _vmem_limit_bytes(tn, cin, cout, itemsize):
    cin_p, cout_p = _round_up(cin, 8), _round_up(cout, 8)
    needed = (cin_p + cout_p) * tn * itemsize * 2 + (4 << 20)
    return int(min(max(32 << 20, needed), _vmem_capacity_bytes() - (2 << 20)))


def _outconv_vpu_kernel(x_ref, w_ref, b_ref, o_ref, *, cin, cout):
    """Tiny-channel path: unrolled VPU multiply-accumulate, no MXU.

    x_ref: (cin, ts, 128)  VMEM activation tile (spatial dense on sublanes+lanes)
    w_ref: (cout, cin)     SMEM f32 weights (scalar reads)
    b_ref: (cout,)         SMEM f32 bias
    o_ref: (cout, ts, 128) VMEM output tile (full-vreg stores)
    """
    xs = [x_ref[ci].astype(jnp.float32) for ci in range(cin)]
    for co in range(cout):
        acc = xs[0] * w_ref[co, 0]
        for ci in range(1, cin):
            acc = acc + xs[ci] * w_ref[co, ci]
        o_ref[co] = (acc + b_ref[co]).astype(o_ref.dtype)


def _outconv_mxu_kernel(x_ref, w_ref, b_ref, o_ref):
    """Fallback: out(Cout, tn) = W(Cout, Cin) @ X(Cin, tn) + b."""
    acc = jnp.dot(w_ref[...], x_ref[...], preferred_element_type=jnp.float32)
    o_ref[...] = (acc + b_ref[...]).astype(o_ref.dtype)


@jax.jit
def out_conv(x, weight, bias=None):
    """PyTorch OutConv forward (nn.Conv3d with kernel_size=1).

    x:      (N, C_in, D, H, W)
    weight: (C_out, C_in, 1, 1, 1)
    bias:   (C_out,) or None
    returns (N, C_out, D, H, W), dtype of x (f32 or bf16; accumulation in f32)
    """
    N, Cin, D, H, W = x.shape
    Cout = weight.shape[0]
    S = D * H * W
    itemsize = jnp.dtype(x.dtype).itemsize

    if bias is None:
        bias = jnp.zeros((Cout,), jnp.float32)

    tn = _pick_tn(S, N, Cin, Cout, itemsize)
    vmem_limit = _vmem_limit_bytes(tn, Cin, Cout, itemsize)
    cparams = pltpu.CompilerParams(
        dimension_semantics=("parallel", "parallel"),
        vmem_limit_bytes=vmem_limit)

    # VPU path: small channel counts and spatial size divisible by 128 (the
    # common UNet head case).  Keeps the vector-extended (MXU push) slot free
    # so the kernel stays purely HBM-bandwidth-bound at large tiles.
    use_vpu = (S % 128 == 0) and (Cin * Cout <= 256)

    if use_vpu:
        S128 = S // 128
        ts = min(tn // 128, S128)          # multiple of 8, or the full extent
        num_s = pl.cdiv(S128, ts)
        x4 = x.reshape(N, Cin, S128, 128)  # free metadata reshape
        w2 = weight.reshape(Cout, Cin).astype(jnp.float32)
        b1 = bias.reshape(Cout).astype(jnp.float32)

        out4 = pl.pallas_call(
            functools.partial(_outconv_vpu_kernel, cin=Cin, cout=Cout),
            out_shape=jax.ShapeDtypeStruct((N, Cout, S128, 128), x.dtype),
            grid_spec=pltpu.PrefetchScalarGridSpec(
                num_scalar_prefetch=0,
                grid=(N, num_s),
                in_specs=[
                    pl.BlockSpec((None, Cin, ts, 128), lambda n, s: (n, 0, s, 0)),
                    pl.BlockSpec(memory_space=pltpu.MemorySpace.SMEM),
                    pl.BlockSpec(memory_space=pltpu.MemorySpace.SMEM),
                ],
                out_specs=pl.BlockSpec((None, Cout, ts, 128),
                                       lambda n, s: (n, 0, s, 0)),
            ),
            compiler_params=cparams,
        )(x4, w2, b1)
        return out4.reshape(N, Cout, D, H, W)

    # MXU fallback: odd spatial extents or large channel counts.
    x3 = x.reshape(N, Cin, S)
    w2 = weight.reshape(Cout, Cin).astype(x.dtype)  # documented: matmul in x dtype, f32 acc
    b2 = bias.reshape(Cout, 1).astype(jnp.float32)
    tn_eff = S if S <= tn else tn
    num_s = pl.cdiv(S, tn_eff)

    out3 = pl.pallas_call(
        _outconv_mxu_kernel,
        out_shape=jax.ShapeDtypeStruct((N, Cout, S), x.dtype),
        grid_spec=pltpu.PrefetchScalarGridSpec(
            num_scalar_prefetch=0,
            grid=(N, num_s),
            in_specs=[
                pl.BlockSpec((None, Cin, tn_eff), lambda n, s: (n, 0, s)),
                pl.BlockSpec((Cout, Cin), lambda n, s: (0, 0)),
                pl.BlockSpec((Cout, 1), lambda n, s: (0, 0)),
            ],
            out_specs=pl.BlockSpec((None, Cout, tn_eff), lambda n, s: (n, 0, s)),
        ),
        compiler_params=cparams,
    )(x3, w2, b2)
    return out3.reshape(N, Cout, D, H, W)


def _reference(x, weight, bias):
    Cout, Cin = weight.shape[0], weight.shape[1]
    return (jnp.einsum("ncdhw,oc->nodhw", x.astype(jnp.float32),
                       weight.reshape(Cout, Cin).astype(jnp.float32))
            + bias.reshape(1, Cout, 1, 1, 1)).astype(x.dtype)


if __name__ == "__main__":
    key = jax.random.PRNGKey(0)
    kx, kw, kb, kx2 = jax.random.split(key, 4)

    # Case 1: UNet-head-like shapes, S = 512 (divisible by 128 -> VPU path).
    N, Cin, Cout, D, H, W = 2, 4, 3, 8, 8, 8
    x = jax.random.normal(kx, (N, Cin, D, H, W), dtype=jnp.float32)
    bound = 1.0 / (Cin ** 0.5)
    weight = jax.random.uniform(kw, (Cout, Cin, 1, 1, 1), dtype=jnp.float32,
                                minval=-bound, maxval=bound)
    bias = jax.random.uniform(kb, (Cout,), dtype=jnp.float32,
                              minval=-bound, maxval=bound)

    out = jax.block_until_ready(out_conv(x, weight, bias))
    ref = _reference(x, weight, bias)
    assert out.shape == (N, Cout, D, H, W)
    assert jnp.allclose(out, ref, atol=1e-5, rtol=1e-5)

    # Case 2: odd spatial extent (S = 315, not divisible by 128) -> MXU
    # fallback path with masked partial last block (no padding in wrapper).
    D2, H2, W2 = 5, 7, 9
    x2 = jax.random.normal(kx2, (N, Cin, D2, H2, W2), dtype=jnp.float32)
    out2 = jax.block_until_ready(out_conv(x2, weight, bias))
    ref2 = _reference(x2, weight, bias)
    assert out2.shape == (N, Cout, D2, H2, W2)
    assert jnp.allclose(out2, ref2, atol=1e-5, rtol=1e-5)

    # Case 3: bias=None (Conv3d(bias=False)) path.
    out3 = jax.block_until_ready(out_conv(x, weight, None))
    ref3 = _reference(x, weight, jnp.zeros((Cout,), jnp.float32))
    assert jnp.allclose(out3, ref3, atol=1e-5, rtol=1e-5)

    print("KERNEL_OK")
</pallas_src>

<mosaic_0001>
module attributes {stable_mosaic.version = 11 : i64} {
  func.func @_outconv_vpu_kernel(%arg0: i32, %arg1: i32, %arg2: memref<1x4x4x128xf32, #tpu.memory_space<vmem>>, %arg3: memref<3x4xf32, #tpu.memory_space<smem>>, %arg4: memref<3xf32, #tpu.memory_space<smem>>, %arg5: memref<1x3x4x128xf32, #tpu.memory_space<vmem>>) attributes {dimension_semantics = [#tpu.dimension_semantics<parallel>, #tpu.dimension_semantics<parallel>], iteration_bounds = array<i64: 2, 1>, scalar_prefetch = 0 : i64, scratch_operands = 0 : i64, tpu.core_type = #tpu.core_type<tc>, window_params = [{transform_indices = @transform_0, window_bounds = array<i64: 1, 4, 4, 128>}, {transform_indices = @transform_1, window_bounds = array<i64: 3, 4>}, {transform_indices = @transform_2, window_bounds = array<i64: 3>}, {transform_indices = @transform_3, window_bounds = array<i64: 1, 3, 4, 128>}]} {
    %c0 = arith.constant 0 : index
    %c0_0 = arith.constant 0 : index
    %c0_1 = arith.constant 0 : index
    %c0_2 = arith.constant 0 : index
    %0 = vector.load %arg2[%c0, %c0_0, %c0_1, %c0_2] : memref<1x4x4x128xf32, #tpu.memory_space<vmem>>, vector<1x1x4x128xf32>
    %1 = vector.shape_cast %0 : vector<1x1x4x128xf32> to vector<4x128xf32>
    %c0_3 = arith.constant 0 : index
    %c1 = arith.constant 1 : index
    %c0_4 = arith.constant 0 : index
    %c0_5 = arith.constant 0 : index
    %2 = vector.load %arg2[%c0_3, %c1, %c0_4, %c0_5] : memref<1x4x4x128xf32, #tpu.memory_space<vmem>>, vector<1x1x4x128xf32>
    %3 = vector.shape_cast %2 : vector<1x1x4x128xf32> to vector<4x128xf32>
    %c0_6 = arith.constant 0 : index
    %c2 = arith.constant 2 : index
    %c0_7 = arith.constant 0 : index
    %c0_8 = arith.constant 0 : index
    %4 = vector.load %arg2[%c0_6, %c2, %c0_7, %c0_8] : memref<1x4x4x128xf32, #tpu.memory_space<vmem>>, vector<1x1x4x128xf32>
    %5 = vector.shape_cast %4 : vector<1x1x4x128xf32> to vector<4x128xf32>
    %c0_9 = arith.constant 0 : index
    %c3 = arith.constant 3 : index
    %c0_10 = arith.constant 0 : index
    %c0_11 = arith.constant 0 : index
    %6 = vector.load %arg2[%c0_9, %c3, %c0_10, %c0_11] : memref<1x4x4x128xf32, #tpu.memory_space<vmem>>, vector<1x1x4x128xf32>
    %7 = vector.shape_cast %6 : vector<1x1x4x128xf32> to vector<4x128xf32>
    %c0_12 = arith.constant 0 : index
    %c0_13 = arith.constant 0 : index
    %8 = memref.load %arg3[%c0_12, %c0_13] : memref<3x4xf32, #tpu.memory_space<smem>>
    %9 = vector.broadcast %8 : f32 to vector<4x128xf32>
    %10 = arith.mulf %1, %9 : vector<4x128xf32>
    %c0_14 = arith.constant 0 : index
    %c1_15 = arith.constant 1 : index
    %11 = memref.load %arg3[%c0_14, %c1_15] : memref<3x4xf32, #tpu.memory_space<smem>>
    %12 = vector.broadcast %11 : f32 to vector<4x128xf32>
    %13 = arith.mulf %3, %12 : vector<4x128xf32>
    %14 = arith.addf %10, %13 : vector<4x128xf32>
    %c0_16 = arith.constant 0 : index
    %c2_17 = arith.constant 2 : index
    %15 = memref.load %arg3[%c0_16, %c2_17] : memref<3x4xf32, #tpu.memory_space<smem>>
    %16 = vector.broadcast %15 : f32 to vector<4x128xf32>
    %17 = arith.mulf %5, %16 : vector<4x128xf32>
    %18 = arith.addf %14, %17 : vector<4x128xf32>
    %c0_18 = arith.constant 0 : index
    %c3_19 = arith.constant 3 : index
    %19 = memref.load %arg3[%c0_18, %c3_19] : memref<3x4xf32, #tpu.memory_space<smem>>
    %20 = vector.broadcast %19 : f32 to vector<4x128xf32>
    %21 = arith.mulf %7, %20 : vector<4x128xf32>
    %22 = arith.addf %18, %21 : vector<4x128xf32>
    %c0_20 = arith.constant 0 : index
    %23 = memref.load %arg4[%c0_20] : memref<3xf32, #tpu.memory_space<smem>>
    %24 = vector.broadcast %23 : f32 to vector<4x128xf32>
    %25 = arith.addf %22, %24 : vector<4x128xf32>
    %c0_21 = arith.constant 0 : index
    %c0_22 = arith.constant 0 : index
    %c0_23 = arith.constant 0 : index
    %c0_24 = arith.constant 0 : index
    %26 = vector.load %arg5[%c0_21, %c0_22, %c0_23, %c0_24] : memref<1x3x4x128xf32, #tpu.memory_space<vmem>>, vector<1x1x4x128xf32>
    %27 = vector.shape_cast %26 : vector<1x1x4x128xf32> to vector<4x128xf32>
    %28 = vector.shape_cast %25 : vector<4x128xf32> to vector<1x1x4x128xf32>
    tpu.vector_store %arg5[%c0_21, %c0_22, %c0_23, %c0_24], %28 {strides = array<i32>} : memref<1x3x4x128xf32, #tpu.memory_space<vmem>>, vector<1x1x4x128xf32>,
    %c1_25 = arith.constant 1 : index
    %c0_26 = arith.constant 0 : index
    %29 = memref.load %arg3[%c1_25, %c0_26] : memref<3x4xf32, #tpu.memory_space<smem>>
    %30 = vector.broadcast %29 : f32 to vector<4x128xf32>
    %31 = arith.mulf %1, %30 : vector<4x128xf32>
    %c1_27 = arith.constant 1 : index
    %c1_28 = arith.constant 1 : index
    %32 = memref.load %arg3[%c1_27, %c1_28] : memref<3x4xf32, #tpu.memory_space<smem>>
    %33 = vector.broadcast %32 : f32 to vector<4x128xf32>
    %34 = arith.mulf %3, %33 : vector<4x128xf32>
    %35 = arith.addf %31, %34 : vector<4x128xf32>
    %c1_29 = arith.constant 1 : index
    %c2_30 = arith.constant 2 : index
    %36 = memref.load %arg3[%c1_29, %c2_30] : memref<3x4xf32, #tpu.memory_space<smem>>
    %37 = vector.broadcast %36 : f32 to vector<4x128xf32>
    %38 = arith.mulf %5, %37 : vector<4x128xf32>
    %39 = arith.addf %35, %38 : vector<4x128xf32>
    %c1_31 = arith.constant 1 : index
    %c3_32 = arith.constant 3 : index
    %40 = memref.load %arg3[%c1_31, %c3_32] : memref<3x4xf32, #tpu.memory_space<smem>>
    %41 = vector.broadcast %40 : f32 to vector<4x128xf32>
    %42 = arith.mulf %7, %41 : vector<4x128xf32>
    %43 = arith.addf %39, %42 : vector<4x128xf32>
    %c1_33 = arith.constant 1 : index
    %44 = memref.load %arg4[%c1_33] : memref<3xf32, #tpu.memory_space<smem>>
    %45 = vector.broadcast %44 : f32 to vector<4x128xf32>
    %46 = arith.addf %43, %45 : vector<4x128xf32>
    %c0_34 = arith.constant 0 : index
    %c1_35 = arith.constant 1 : index
    %c0_36 = arith.constant 0 : index
    %c0_37 = arith.constant 0 : index
    %47 = vector.load %arg5[%c0_34, %c1_35, %c0_36, %c0_37] : memref<1x3x4x128xf32, #tpu.memory_space<vmem>>, vector<1x1x4x128xf32>
    %48 = vector.shape_cast %47 : vector<1x1x4x128xf32> to vector<4x128xf32>
    %49 = vector.shape_cast %46 : vector<4x128xf32> to vector<1x1x4x128xf32>
    tpu.vector_store %arg5[%c0_34, %c1_35, %c0_36, %c0_37], %49 {strides = array<i32>} : memref<1x3x4x128xf32, #tpu.memory_space<vmem>>, vector<1x1x4x128xf32>,
    %c2_38 = arith.constant 2 : index
    %c0_39 = arith.constant 0 : index
    %50 = memref.load %arg3[%c2_38, %c0_39] : memref<3x4xf32, #tpu.memory_space<smem>>
    %51 = vector.broadcast %50 : f32 to vector<4x128xf32>
    %52 = arith.mulf %1, %51 : vector<4x128xf32>
    %c2_40 = arith.constant 2 : index
    %c1_41 = arith.constant 1 : index
    %53 = memref.load %arg3[%c2_40, %c1_41] : memref<3x4xf32, #tpu.memory_space<smem>>
    %54 = vector.broadcast %53 : f32 to vector<4x128xf32>
    %55 = arith.mulf %3, %54 : vector<4x128xf32>
    %56 = arith.addf %52, %55 : vector<4x128xf32>
    %c2_42 = arith.constant 2 : index
    %c2_43 = arith.constant 2 : index
    %57 = memref.load %arg3[%c2_42, %c2_43] : memref<3x4xf32, #tpu.memory_space<smem>>
    %58 = vector.broadcast %57 : f32 to vector<4x128xf32>
    %59 = arith.mulf %5, %58 : vector<4x128xf32>
    %60 = arith.addf %56, %59 : vector<4x128xf32>
    %c2_44 = arith.constant 2 : index
    %c3_45 = arith.constant 3 : index
    %61 = memref.load %arg3[%c2_44, %c3_45] : memref<3x4xf32, #tpu.memory_space<smem>>
    %62 = vector.broadcast %61 : f32 to vector<4x128xf32>
    %63 = arith.mulf %7, %62 : vector<4x128xf32>
    %64 = arith.addf %60, %63 : vector<4x128xf32>
    %c2_46 = arith.constant 2 : index
    %65 = memref.load %arg4[%c2_46] : memref<3xf32, #tpu.memory_space<smem>>
    %66 = vector.broadcast %65 : f32 to vector<4x128xf32>
    %67 = arith.addf %64, %66 : vector<4x128xf32>
    %c0_47 = arith.constant 0 : index
    %c2_48 = arith.constant 2 : index
    %c0_49 = arith.constant 0 : index
    %c0_50 = arith.constant 0 : index
    %68 = vector.load %arg5[%c0_47, %c2_48, %c0_49, %c0_50] : memref<1x3x4x128xf32, #tpu.memory_space<vmem>>, vector<1x1x4x128xf32>
    %69 = vector.shape_cast %68 : vector<1x1x4x128xf32> to vector<4x128xf32>
    %70 = vector.shape_cast %67 : vector<4x128xf32> to vector<1x1x4x128xf32>
    tpu.vector_store %arg5[%c0_47, %c2_48, %c0_49, %c0_50], %70 {strides = array<i32>} : memref<1x3x4x128xf32, #tpu.memory_space<vmem>>, vector<1x1x4x128xf32>,
    return
  }
  func.func @transform_0(%arg0: i32, %arg1: i32) -> (i32, i32, i32, i32) {
    %c0_i32 = arith.constant 0 : i32
    %c0_i32_0 = arith.constant 0 : i32
    %c0_i32_1 = arith.constant 0 : i32
    return %arg0, %c0_i32, %arg1, %c0_i32_0 : i32, i32, i32, i32
  }
  func.func @transform_1(%arg0: i32, %arg1: i32) -> (i32, i32) {
    %c0_i32 = arith.constant 0 : i32
    %c0_i32_0 = arith.constant 0 : i32
    %c0_i32_1 = arith.constant 0 : i32
    return %c0_i32, %c0_i32_0 : i32, i32
  }
  func.func @transform_2(%arg0: i32, %arg1: i32) -> i32 {
    %c0_i32 = arith.constant 0 : i32
    %c0_i32_0 = arith.constant 0 : i32
    return %c0_i32 : i32
  }
  func.func @transform_3(%arg0: i32, %arg1: i32) -> (i32, i32, i32, i32) {
    %c0_i32 = arith.constant 0 : i32
    %c0_i32_0 = arith.constant 0 : i32
    %c0_i32_1 = arith.constant 0 : i32
    return %arg0, %c0_i32, %arg1, %c0_i32_0 : i32, i32, i32, i32
  }
}

</mosaic_0001>

<llo_original>
// kernel: out_conv.1
$region0: #{out_conv.1}
  #allocation0 [shape = 'u32[]', space=smem, size = 0x4, offset = 0x4, fixed_abs, tag = 'smem constant byte address 0x4 - core index']
  #allocation1 [shape = 'u32[72,128]{1,0:T(1,128)}', space=vmem, size = 0x9000, scoped, tag = 'internal scratch']
  %s0 = inlined_call_operand.vmem [shape: f32[2,4,4,128], index: 0, kind: input, shape index: {}]
  %s1 = inlined_call_operand.vmem [shape: f32[3,4], index: 1, kind: input, shape index: {}]
  %s2 = inlined_call_operand.vmem [shape: f32[3], index: 2, kind: input, shape index: {}]
  %s3 = inlined_call_operand.vmem [shape: f32[2,3,4,128], index: 3, kind: output, shape index: {}]
  %s4 = sld [smem:[#allocation0]]
  $region53: #{out_conv.1} parent=0
    _
  %s6 = ssub.s32 1, %s4
  %s7 = scalar_select 0, %s6, %s4
  $region1: #{out_conv.1} parent=0
    #allocation2 [shape = 'u8[2048]{0}', space=smem, size = 0x800, scoped, tag = 'input window, operand 1, single buffered']
    #allocation3 [shape = 's32[2]{0}', space=sflag, size = 0x8, scoped, tag = 'scoped memory for out_conv.1']
    #allocation4 [shape = 'u8[512]{0}', space=smem, size = 0x200, scoped, tag = 'input window, operand 2, single buffered']
    #allocation5 [shape = 's32[1]{0}', space=sflag, size = 0x4, scoped, tag = 'scoped memory for out_conv.1']
    %8 = vsyncpa [#allocation3], 0
    %9 = vsyncpa [#allocation5], 0
    loop: start=0, step=1, limit=4
    $region2: #{out_conv.1} parent=1 // loop_pre_header
      _
    $region3: #{out_conv.1} parent=1 // loop_header
      %s11 = sphi 0, %s15
      %p12 = scmp.ge.s32.totalorder %s11, 4
      %s18 = sphi 0, %s30
      %s19 = sphi 0, %s26
      %s20 = sphi 0, %s18
      %s21 = sphi 0, %s19
      %s22 = sphi 0, %s20
      %s23 = sphi 0, %s21
      %s35 = sphi 0, %s37
      %s38 = sphi 0, %s35
      %s39 = sphi 0, %s38
      %s55 = sphi 0, %s39
      %s59 = sphi 0, %s59
      %s61 = sphi 0, %s59
      %s62 = sphi 0, %s61
      %s76 = sphi 0, %s62
      %s80 = sphi 0, %s80
      %s82 = sphi 0, %s80
      %s83 = sphi 0, %s82
      %s97 = sphi 0, %s83
      %s105 = sphi 0, %s107
      %s108 = sphi 0, %s105
      %s109 = sphi 0, %s108
      %s125 = sphi 0, %s109
    $region4: #{out_conv.1} parent=1 // loop_header_branch
      %14 = sbr.rel (%p12) target = $region8
    $region5: #{out_conv.1} parent=1 // loop_body
      %s16 = ssub.s32 %s11, 1
      %s17 = ssub.s32 %s11, 2
      %s24 = sadd.s32 1, %s19
      %p25 = scmp.ge.s32.totalorder %s24, 1
      %s26 = scalar_select %p25, 0, %s24
      %s27 = sadd.s32 1, %s18
      %s28 = scalar_select %p25, %s27, %s18
      %p29 = scmp.ge.s32.totalorder %s28, 2
      %s30 = scalar_select %p29, 0, %s28
      %s31 = ssub.s32 %s18, %s30
      %s32 = ssub.s32 %s19, %s26
      %s33 = sor.u32 %s31, %s32
      %p34 = scmp.eq.s32.totalorder %s33, 0
      %s36 = sadd.s32 %s35, 1
      %s37 = scalar_select %p34, %s35, %s36
      %p40 = pneg %p34
      %p41 = scmp.eq.s32.totalorder %s11, 1
      %p42 = por %p40, %p41
      %p43 = scmp.ne.s32.totalorder %s35, %s38
      %p44 = scmp.eq.s32.totalorder %s11, 0
      %p45 = por %p43, %p44
      %p46 = scmp.ne.s32.totalorder %s35, %s38
      %p47 = scmp.eq.s32.totalorder %s16, 1
      %p48 = por %p46, %p47
      %p49 = scmp.ne.s32.totalorder %s38, %s39
      %p50 = scmp.eq.s32.totalorder %s16, 0
      %p51 = por %p49, %p50
      %p52 = scmp.ne.s32.totalorder %s38, %s39
      %p53 = scmp.eq.s32.totalorder %s17, 1
      %p54 = por %p52, %p53
      %p56 = scmp.ne.s32.totalorder %s39, %s55
      %p57 = scmp.eq.s32.totalorder %s17, 0
      %p58 = por %p56, %p57
      %s60 = sadd.s32 %s59, 1
      %p63 = scmp.eq.s32.totalorder %s11, 1
      %p64 = scmp.ne.s32.totalorder %s59, %s61
      %p65 = scmp.eq.s32.totalorder %s11, 0
      %p66 = por %p64, %p65
      %p67 = scmp.ne.s32.totalorder %s59, %s61
      %p68 = scmp.eq.s32.totalorder %s16, 1
      %p69 = por %p67, %p68
      %p70 = scmp.ne.s32.totalorder %s61, %s62
      %p71 = scmp.eq.s32.totalorder %s16, 0
      %p72 = por %p70, %p71
      %p73 = scmp.ne.s32.totalorder %s61, %s62
      %p74 = scmp.eq.s32.totalorder %s17, 1
      %p75 = por %p73, %p74
      %p77 = scmp.ne.s32.totalorder %s62, %s76
      %p78 = scmp.eq.s32.totalorder %s17, 0
      %p79 = por %p77, %p78
      %s81 = sadd.s32 %s80, 1
      %p84 = scmp.eq.s32.totalorder %s11, 1
      %p85 = scmp.ne.s32.totalorder %s80, %s82
      %p86 = scmp.eq.s32.totalorder %s11, 0
      %p87 = por %p85, %p86
      %p88 = scmp.ne.s32.totalorder %s80, %s82
      %p89 = scmp.eq.s32.totalorder %s16, 1
      %p90 = por %p88, %p89
      %p91 = scmp.ne.s32.totalorder %s82, %s83
      %p92 = scmp.eq.s32.totalorder %s16, 0
      %p93 = por %p91, %p92
      %p94 = scmp.ne.s32.totalorder %s82, %s83
      %p95 = scmp.eq.s32.totalorder %s17, 1
      %p96 = por %p94, %p95
      %p98 = scmp.ne.s32.totalorder %s83, %s97
      %p99 = scmp.eq.s32.totalorder %s17, 0
      %p100 = por %p98, %p99
      %s101 = ssub.s32 %s18, %s30
      %s102 = ssub.s32 %s19, %s26
      %s103 = sor.u32 %s101, %s102
      %p104 = scmp.eq.s32.totalorder %s103, 0
      %s106 = sadd.s32 %s105, 1
      %s107 = scalar_select %p104, %s105, %s106
      %p110 = pneg %p104
      %p111 = scmp.eq.s32.totalorder %s11, 1
      %p112 = por %p110, %p111
      %p113 = scmp.ne.s32.totalorder %s105, %s108
      %p114 = scmp.eq.s32.totalorder %s11, 0
      %p115 = por %p113, %p114
      %p116 = scmp.ne.s32.totalorder %s105, %s108
      %p117 = scmp.eq.s32.totalorder %s16, 1
      %p118 = por %p116, %p117
      %p119 = scmp.ne.s32.totalorder %s108, %s109
      %p120 = scmp.eq.s32.totalorder %s16, 0
      %p121 = por %p119, %p120
      %p122 = scmp.ne.s32.totalorder %s108, %s109
      %p123 = scmp.eq.s32.totalorder %s17, 1
      %p124 = por %p122, %p123
      %p126 = scmp.ne.s32.totalorder %s109, %s125
      %p127 = scmp.eq.s32.totalorder %s17, 0
      %p128 = por %p126, %p127
      %p129 = scmp.le.s32.totalorder 1, %s11
      %p130 = scmp.lt.s32.totalorder %s11, 3
      %p131 = pnand %p129, %p130
      %p132 = pneg %p131
      // Predicated region
      $region9: #{out_conv.1} parent=5 // pred_check
        _
      $region10: #{out_conv.1} parent=5 // pred_check_branch
        %134 = sbr.rel (%p131) target = $region12
      $region11: #{out_conv.1} parent=5 // pred_region
        %s135 = ssub.s32 %s11, 1
        // Predicated region
        $region13: #{out_conv.1} parent=11 // pred_check
          %p136 = pneg %p72
        $region14: #{out_conv.1} parent=11 // pred_check_branch
          %138 = sbr.rel (%p136) target = $region16
        $region15: #{out_conv.1} parent=11 // pred_region
          %140 = vsyncadd [#allocation3], 0
          %s142 = sshll.u32 %s1, 4
          %s143 = int_to_ptr.vmem [resolvable:$true] %s142
          %145 = dma.vmem_to_smem %s143, 64, [#allocation2], [#allocation3]
        $region16: #{out_conv.1} parent=11 // pred_fallthru
          _
        // Predicated region
        $region17: #{out_conv.1} parent=11 // pred_check
          %p146 = pneg %p93
        $region18: #{out_conv.1} parent=11 // pred_check_branch
          %148 = sbr.rel (%p146) target = $region20
        $region19: #{out_conv.1} parent=11 // pred_region
          %150 = vsyncadd [#allocation5], 0
          %s152 = sshll.u32 %s2, 4
          %s153 = int_to_ptr.vmem [resolvable:$true] %s152
          %155 = dma.vmem_to_smem %s153, 16, [#allocation4], [#allocation5]
        $region20: #{out_conv.1} parent=11 // pred_fallthru
          _
      $region12: #{out_conv.1} parent=5 // pred_fallthru
        _
      %p156 = scmp.lt.s32.totalorder %s11, 2
      // Predicated region
      $region21: #{out_conv.1} parent=5 // pred_check
        %p157 = pneg %p156
      $region22: #{out_conv.1} parent=5 // pred_check_branch
        %159 = sbr.rel (%p157) target = $region24
      $region23: #{out_conv.1} parent=5 // pred_region
        // Predicated region
        $region25: #{out_conv.1} parent=23 // pred_check
          %p160 = pneg %p45
        $region26: #{out_conv.1} parent=23 // pred_check_branch
          %162 = sbr.rel (%p160) target = $region28
        $region27: #{out_conv.1} parent=23 // pred_region
          %p163 = scmp.lt.s32.totalorder %s18, 1
          %s164 = scalar_select %p163, %s18, 1
          %p165 = scmp.lt.s32.totalorder %s19, 0
          %s166 = scalar_select %p165, %s19, 0
          %s167 = smul.addr %s164, 4
          %s168 = sadd.s32 %s166, %s167
          %s169 = smul.addr %s168, 4
          %s170 = scalar_lea.vmem %s0, %s169
        $region28: #{out_conv.1} parent=23 // pred_fallthru
          _
      $region24: #{out_conv.1} parent=5 // pred_fallthru
        _
      %p171 = scmp.le.s32.totalorder 1, %s11
      %p172 = scmp.lt.s32.totalorder %s11, 3
      %p173 = pnand %p171, %p172
      %p174 = pneg %p173
      // Predicated region
      $region29: #{out_conv.1} parent=5 // pred_check
        _
      $region30: #{out_conv.1} parent=5 // pred_check_branch
        %176 = sbr.rel (%p173) target = $region32
      $region31: #{out_conv.1} parent=5 // pred_region
        %s177 = ssub.s32 %s11, 1
        // Predicated region
        $region33: #{out_conv.1} parent=31 // pred_check
          %p178 = pneg %p72
        $region34: #{out_conv.1} parent=31 // pred_check_branch
          %180 = sbr.rel (%p178) target = $region36
        $region35: #{out_conv.1} parent=31 // pred_region
          %182 = dma.done [#allocation3], 64
        $region36: #{out_conv.1} parent=31 // pred_fallthru
          _
        // Predicated region
        $region37: #{out_conv.1} parent=31 // pred_check
          %p183 = pneg %p93
        $region38: #{out_conv.1} parent=31 // pred_check_branch
          %185 = sbr.rel (%p183) target = $region40
        $region39: #{out_conv.1} parent=31 // pred_region
          %187 = dma.done [#allocation5], 16
        $region40: #{out_conv.1} parent=31 // pred_fallthru
          _
        %188 = sfence
        %p189 = scmp.lt.s32.totalorder %s20, 1
        %s190 = scalar_select %p189, %s20, 1
        %p191 = scmp.lt.s32.totalorder %s21, 0
        %s192 = scalar_select %p191, %s21, 0
        %s193 = smul.addr %s190, 4
        %s194 = sadd.s32 %s192, %s193
        %s195 = smul.addr %s194, 4
        %s196 = scalar_lea.vmem %s0, %s195
        %p197 = pneg %p51
        %p198 = pneg %p48
        %p199 = pneg %p72
        %p200 = pneg %p69
        %p201 = pneg %p93
        %p202 = pneg %p90
        %p203 = pneg %p121
        %p204 = pneg %p118
        %p205 = scmp.lt.s32.totalorder %s20, 1
        %s206 = scalar_select %p205, %s20, 1
        %p207 = scmp.lt.s32.totalorder %s21, 0
        %s208 = scalar_select %p207, %s21, 0
        %s209 = smul.addr %s206, 3
        %s210 = sadd.s32 %s208, %s209
        %s211 = smul.addr %s210, 4
        %s212 = scalar_lea.vmem %s3, %s211
        %p213 = scmp.lt.s32.totalorder %s20, 1
        %s214 = scalar_select %p213, %s20, 1
        %p215 = scmp.lt.s32.totalorder %s21, 0
        %s216 = scalar_select %p215, %s21, 0
        %s217 = smul.addr %s214, 4
        %s218 = sadd.s32 %s216, %s217
        %s219 = smul.addr %s218, 4
        %s220 = scalar_lea.vmem %s0, %s219
        %p221 = scmp.lt.s32.totalorder %s20, 1
        %s222 = scalar_select %p221, %s20, 1
        %p223 = scmp.lt.s32.totalorder %s21, 0
        %s224 = scalar_select %p223, %s21, 0
        %s225 = smul.addr %s222, 3
        %s226 = sadd.s32 %s224, %s225
        %s227 = smul.addr %s226, 4
        %s228 = scalar_lea.vmem %s3, %s227
        %v229 = vld [vmem:[%s220] sm:$0xf]
        %s230 = scalar_lea.vmem %s220, 4
        %v231 = vld [vmem:[%s230] sm:$0xf]
        %s232 = scalar_lea.vmem %s220, 8
        %v233 = vld [vmem:[%s232] sm:$0xf]
        %s234 = scalar_lea.vmem %s220, 12
        %v235 = vld [vmem:[%s234] sm:$0xf]
        %s236 = sld [smem:[#allocation2]]
        %v237 = vstv %s236
        %v238 = vmul.f32 %v229, %v237
        %s239 = sld [smem:[#allocation2 + $0x1]]
        %v240 = vstv %s239
        %v241 = vmul.f32 %v231, %v240
        %v242 = vadd.f32 %v238, %v241
        %s243 = sld [smem:[#allocation2 + $0x2]]
        %v244 = vstv %s243
        %v245 = vmul.f32 %v233, %v244
        %v246 = vadd.f32 %v242, %v245
        %s247 = sld [smem:[#allocation2 + $0x3]]
        %v248 = vstv %s247
        %v249 = vmul.f32 %v235, %v248
        %v250 = vadd.f32 %v246, %v249
        %s251 = sld [smem:[#allocation4]]
        %v252 = vstv %s251
        %v253 = vadd.f32 %v250, %v252
        %254 = vst [vmem:[%s228] sm:$0xf] %v253
        %s255 = sld [smem:[#allocation2 + $0x80]]
        %v256 = vstv %s255
        %v257 = vmul.f32 %v229, %v256
        %s258 = sld [smem:[#allocation2 + $0x81]]
        %v259 = vstv %s258
        %v260 = vmul.f32 %v231, %v259
        %v261 = vadd.f32 %v257, %v260
        %s262 = sld [smem:[#allocation2 + $0x82]]
        %v263 = vstv %s262
        %v264 = vmul.f32 %v233, %v263
        %v265 = vadd.f32 %v261, %v264
        %s266 = sld [smem:[#allocation2 + $0x83]]
        %v267 = vstv %s266
        %v268 = vmul.f32 %v235, %v267
        %v269 = vadd.f32 %v265, %v268
        %s270 = sld [smem:[#allocation4 + $0x1]]
        %v271 = vstv %s270
        %v272 = vadd.f32 %v269, %v271
        %s273 = scalar_lea.vmem %s228, 4
        %274 = vst [vmem:[%s273] sm:$0xf] %v272
        %s275 = sld [smem:[#allocation2 + $0x100]]
        %v276 = vstv %s275
        %v277 = vmul.f32 %v229, %v276
        %s278 = sld [smem:[#allocation2 + $0x101]]
        %v279 = vstv %s278
        %v280 = vmul.f32 %v231, %v279
        %v281 = vadd.f32 %v277, %v280
        %s282 = sld [smem:[#allocation2 + $0x102]]
        %v283 = vstv %s282
        %v284 = vmul.f32 %v233, %v283
        %v285 = vadd.f32 %v281, %v284
        %s286 = sld [smem:[#allocation2 + $0x103]]
        %v287 = vstv %s286
        %v288 = vmul.f32 %v235, %v287
        %v289 = vadd.f32 %v285, %v288
        %s290 = sld [smem:[#allocation4 + $0x2]]
        %v291 = vstv %s290
        %v292 = vadd.f32 %v289, %v291
        %s293 = scalar_lea.vmem %s228, 8
        %294 = vst [vmem:[%s293] sm:$0xf] %v292
        %p295 = scmp.lt.s32.totalorder %s20, 1
        %s296 = scalar_select %p295, %s20, 1
        %p297 = scmp.lt.s32.totalorder %s21, 0
        %s298 = scalar_select %p297, %s21, 0
        %s299 = smul.addr %s296, 3
        %s300 = sadd.s32 %s298, %s299
        %s301 = smul.addr %s300, 4
        %s302 = scalar_lea.vmem %s3, %s301
        // Predicated region
        $region41: #{out_conv.1} parent=31 // pred_check
          %p303 = pneg %p118
        $region42: #{out_conv.1} parent=31 // pred_check_branch
          %305 = sbr.rel (%p303) target = $region44
        $region43: #{out_conv.1} parent=31 // pred_region
          _
        $region44: #{out_conv.1} parent=31 // pred_fallthru
          _
      $region32: #{out_conv.1} parent=5 // pred_fallthru
        _
      %p306 = scmp.le.s32.totalorder 2, %s11
      // Predicated region
      $region45: #{out_conv.1} parent=5 // pred_check
        %p307 = pneg %p306
      $region46: #{out_conv.1} parent=5 // pred_check_branch
        %309 = sbr.rel (%p307) target = $region48
      $region47: #{out_conv.1} parent=5 // pred_region
        %s310 = ssub.s32 %s11, 2
        // Predicated region
        $region49: #{out_conv.1} parent=47 // pred_check
          %p311 = pneg %p124
        $region50: #{out_conv.1} parent=47 // pred_check_branch
          %313 = sbr.rel (%p311) target = $region52
        $region51: #{out_conv.1} parent=47 // pred_region
          %p314 = scmp.lt.s32.totalorder %s22, 1
          %s315 = scalar_select %p314, %s22, 1
          %p316 = scmp.lt.s32.totalorder %s23, 0
          %s317 = scalar_select %p316, %s23, 0
          %s318 = smul.addr %s315, 3
          %s319 = sadd.s32 %s317, %s318
          %s320 = smul.addr %s319, 4
          %s321 = scalar_lea.vmem %s3, %s320
        $region52: #{out_conv.1} parent=47 // pred_fallthru
          _
      $region48: #{out_conv.1} parent=5 // pred_fallthru
        _
    $region6: #{out_conv.1} parent=1 // loop_footer
      %s15 = sadd.s32 1, %s11
    $region7: #{out_conv.1} parent=1 // loop_footer_branch
      %10 = sbr.rel target = $region3
    $region8: #{out_conv.1} parent=1 // loop_exit
      _
    %322 = vsyncpa [#allocation3], 1
    %s323 = scalar_lea.sflag [#allocation3], 1
    %324 = vsyncpa %s323, 1
    %325 = vsyncpa [#allocation5], 1

</llo_original>
